<compile_context>
chip_gen: v7x
topology: tpu7x:2x2x1
jax: 0.10.0
libtpu: 0.0.40
codegen_flags: <defaults>
</compile_context>

<pallas_src>
import functools

import numpy as np
import jax
import jax.numpy as jnp
from jax.experimental import pallas as pl
from jax.experimental.pallas import tpu as pltpu

_SUBLANES = 8
_LANES = 128
_VREG = _SUBLANES * _LANES       # 1024 positions per packed f32 vreg
_MAX_LANE_TILE = 2048            # lanes per grid step (amortizes ~0.35us/step overhead)


def _round_up(x, m):
    return ((x + m - 1) // m) * m


# ---------------------------------------------------------------------------
# Fused loss kernel: binary weighted cross-entropy + smooth-L1 (beta = 1.0)
# ---------------------------------------------------------------------------
def _fused_loss_kernel(l0_ref, l1_ref, tgt_ref, pdiff_ref,
                       o_wce_ref, o_w_ref, o_sl1_ref, *, eos_coef, tn, lp):
    # l0_ref / l1_ref: (8, TN) f32  logits for class 0 / class 1, lane-dense packed
    # tgt_ref:         (8, TN) i32  target class per position (-1 = ignore / padding)
    # pdiff_ref:       (8, LP) f32  matched-point (src - tgt/scale) diffs, zero padded; resident
    # o_*_ref:         (8, 128) f32 per-lane partial accumulators
    step = pl.program_id(0)

    @pl.when(step == 0)
    def _():
        o_wce_ref[...] = jnp.zeros_like(o_wce_ref)
        o_w_ref[...] = jnp.zeros_like(o_w_ref)
        # Smooth-L1 over matched-point diffs (zero padding contributes exactly 0).
        sl1 = jnp.zeros((_SUBLANES, _LANES), jnp.float32)
        for c in range(lp // _LANES):
            d = pdiff_ref[:, c * _LANES:(c + 1) * _LANES]
            ad = jnp.abs(d)
            sl1 = sl1 + jnp.where(ad < 1.0, 0.5 * d * d, ad - 0.5)
        o_sl1_ref[...] = sl1

    # Binary weighted cross-entropy accumulated as (8,128) per-lane partials
    # (final cross-lane/sublane reduce happens once, in the jit wrapper).
    wce = jnp.zeros((_SUBLANES, _LANES), jnp.float32)
    wsum = jnp.zeros((_SUBLANES, _LANES), jnp.float32)
    for c in range(tn // _LANES):
        sl = slice(c * _LANES, (c + 1) * _LANES)
        l0 = l0_ref[:, sl]
        l1 = l1_ref[:, sl]
        tgt = tgt_ref[:, sl]
        valid = (tgt >= 0).astype(jnp.float32)            # ignore_index = -1 (padding)
        is_fg = tgt == 1
        tgt_logit = jnp.where(is_fg, l1, l0)
        other = jnp.where(is_fg, l0, l1)
        x = other - tgt_logit
        # CE = logsumexp(logits) - logit_tgt = softplus(x), numerically-safe form.
        ce = jnp.maximum(x, 0.0) + jnp.log(1.0 + jnp.exp(-jnp.abs(x)))
        w = jnp.where(tgt == 0, eos_coef, 1.0) * valid     # empty_weight[0]=eos_coef, else 1
        wce = wce + ce * w
        wsum = wsum + w
    o_wce_ref[...] += wce
    o_w_ref[...] += wsum


# ---------------------------------------------------------------------------
# On-device greedy L2 matcher (stand-in for PET's external Hungarian matcher)
# ---------------------------------------------------------------------------
def _greedy_match(pred_points, tgt_points_norm, tgt_valid):
    """pred_points: (B,Q,2); tgt_points_norm: (B,M,2); tgt_valid: (B,M) bool.
    Returns src_idx (B, M) int32: matched prediction per target, -1 if invalid."""
    b, q, _ = pred_points.shape
    m = tgt_points_norm.shape[1]
    cost = jnp.sqrt(jnp.sum(
        (tgt_points_norm[:, :, None, :] - pred_points[:, None, :, :]) ** 2, axis=-1))  # (B,M,Q)
    lane_ids = jnp.arange(q, dtype=jnp.int32)[None, :]

    def body(j, carry):
        used, src_idx = carry
        row = jnp.where(used, jnp.inf, cost[:, j, :])                     # (B, Q)
        s = jnp.argmin(row, axis=-1).astype(jnp.int32)                    # (B,)
        v = tgt_valid[:, j]                                               # (B,)
        used = used | ((lane_ids == s[:, None]) & v[:, None])
        src_idx = src_idx.at[:, j].set(jnp.where(v, s, -1))
        return used, src_idx

    used0 = jnp.zeros((b, q), dtype=bool)
    src0 = jnp.full((b, m), -1, dtype=jnp.int32)
    _, src_idx = jax.lax.fori_loop(0, m, body, (used0, src0))
    return src_idx


def _pack_targets(targets):
    """Ragged target list -> fixed-shape (B,M,2) points, (B,M) labels, (B,M) valid."""
    pts_list = [jnp.asarray(t['points'], jnp.float32).reshape(-1, 2) for t in targets]
    lab_list = [jnp.asarray(t['labels'], jnp.int32).reshape(-1) for t in targets]
    m_max = max(max((p.shape[0] for p in pts_list), default=0), 1)
    pts, labs, valid = [], [], []
    for p, l in zip(pts_list, lab_list):
        n = p.shape[0]
        pts.append(jnp.pad(p, ((0, m_max - n), (0, 0))))
        labs.append(jnp.pad(l, (0, m_max - n)))
        valid.append(jnp.arange(m_max) < n)
    return jnp.stack(pts), jnp.stack(labs), jnp.stack(valid)


# ---------------------------------------------------------------------------
# Single jit region: matcher + target construction + fused Pallas loss kernel
# ---------------------------------------------------------------------------
@functools.partial(jax.jit, static_argnames=("eos_coef",))
def _fused_losses(pred_logits, pred_points, tgt_points, tgt_labels, tgt_valid,
                  img_h, img_w, *, eos_coef):
    b, q, c1 = pred_logits.shape
    assert c1 == 2, "TODO(synk): general-class CE Pallas path not implemented (PET is one-class)"
    m = tgt_points.shape[1]

    scale = jnp.stack([img_h, img_w]).astype(jnp.float32)                # (2,)
    tgt_norm = tgt_points.astype(jnp.float32) / scale                    # (B, M, 2)

    # --- on-device greedy matcher (Hungarian stand-in) ---
    src_idx = _greedy_match(pred_points.astype(jnp.float32), tgt_norm, tgt_valid)  # (B, M)

    # --- target_classes scatter via one-hot (greedy matches are unique per image) ---
    oh = (src_idx[:, :, None] == jnp.arange(q, dtype=jnp.int32)[None, None, :])
    target_classes = jnp.sum(
        oh.astype(jnp.int32) * tgt_labels.astype(jnp.int32)[:, :, None], axis=1)    # (B, Q)

    # --- matched point diffs (invalid rows zeroed -> contribute 0 to smooth-L1) ---
    gidx = jnp.clip(src_idx, 0, q - 1)
    src_pts = jnp.take_along_axis(pred_points.astype(jnp.float32), gidx[:, :, None], axis=1)
    diff = (src_pts - tgt_norm) * tgt_valid[:, :, None].astype(jnp.float32)          # (B, M, 2)

    num_points = jnp.maximum(jnp.sum(tgt_valid.astype(jnp.float32)), 1.0)
    # TODO(synk): torch.distributed all_reduce / world-size division skipped (single host).

    # --- pack CE streams: (8 sublanes, lanes), lanes a multiple of 128 ---
    n = b * q
    lanes = _round_up(n, _VREG) // _SUBLANES
    tn = lanes if lanes <= _MAX_LANE_TILE else _MAX_LANE_TILE
    lanes = _round_up(lanes, tn)
    n_pad = lanes * _SUBLANES

    l0 = jnp.pad(pred_logits[..., 0].reshape(-1).astype(jnp.float32),
                 (0, n_pad - n)).reshape(_SUBLANES, lanes)
    l1 = jnp.pad(pred_logits[..., 1].reshape(-1).astype(jnp.float32),
                 (0, n_pad - n)).reshape(_SUBLANES, lanes)
    tc = jnp.pad(target_classes.reshape(-1), (0, n_pad - n),
                 constant_values=-1).reshape(_SUBLANES, lanes)

    # --- pack matched-point diffs: (8, LP), zero padded ---
    mflat = b * m * 2
    m_pad = max(_VREG, _round_up(mflat, _VREG))
    lp = m_pad // _SUBLANES
    pdiff = jnp.pad(diff.reshape(-1), (0, m_pad - mflat)).reshape(_SUBLANES, lp)

    kernel = functools.partial(_fused_loss_kernel, eos_coef=float(eos_coef), tn=tn, lp=lp)
    acc_wce, acc_w, acc_sl1 = pl.pallas_call(
        kernel,
        out_shape=tuple(jax.ShapeDtypeStruct((_SUBLANES, _LANES), jnp.float32)
                        for _ in range(3)),
        grid_spec=pltpu.PrefetchScalarGridSpec(
            num_scalar_prefetch=0,
            grid=(lanes // tn,),
            in_specs=[
                pl.BlockSpec((_SUBLANES, tn), lambda i: (0, i)),
                pl.BlockSpec((_SUBLANES, tn), lambda i: (0, i)),
                pl.BlockSpec((_SUBLANES, tn), lambda i: (0, i)),
                pl.BlockSpec((_SUBLANES, lp), lambda i: (0, 0)),   # resident block
            ],
            out_specs=[pl.BlockSpec((_SUBLANES, _LANES), lambda i: (0, 0))
                       for _ in range(3)],
        ),
        compiler_params=pltpu.CompilerParams(dimension_semantics=("arbitrary",)),
    )(l0, l1, tc, pdiff)

    loss_ce = jnp.sum(acc_wce) / jnp.sum(acc_w)     # torch weighted-mean CE
    loss_points = jnp.sum(acc_sl1) / num_points
    return {'loss_ce': loss_ce, 'loss_points': loss_points}


# ---------------------------------------------------------------------------
# SetCriterion (forward-pass semantics of the PyTorch module, default path)
# ---------------------------------------------------------------------------
class SetCriterion:
    def __init__(self, num_classes, matcher, weight_dict, eos_coef, losses):
        if num_classes != 1:
            # TODO(synk): general-class (C > 2) onehot CE Pallas path not implemented.
            raise NotImplementedError("PET SetCriterion is one-class crowd counting")
        self.num_classes = num_classes
        # TODO(synk): external Hungarian matcher replaced by on-device greedy L2 matcher.
        self.matcher = matcher
        self.weight_dict = weight_dict
        self.eos_coef = eos_coef
        self.losses = losses
        ew = np.ones(num_classes + 1, dtype=np.float32)
        ew[0] = eos_coef
        self.empty_weight = jnp.asarray(ew)
        self.div_thrs_dict = {8: 0.0, 4: 0.5}

    def forward(self, outputs, targets, **kwargs):
        if 'div' in kwargs:
            # TODO(synk): 'div' split-map weighted loss branch not implemented (default path only).
            raise NotImplementedError("'div' split-map loss branch not implemented")
        img_h, img_w = outputs['img_shape']
        tgt_points, tgt_labels, tgt_valid = _pack_targets(targets)
        all_losses = _fused_losses(
            outputs['pred_logits'], outputs['pred_points'],
            tgt_points, tgt_labels, tgt_valid,
            jnp.float32(img_h), jnp.float32(img_w),
            eos_coef=float(self.eos_coef))
        losses = {}
        for loss in self.losses:
            if loss == 'labels':
                losses['loss_ce'] = all_losses['loss_ce']
            elif loss == 'points':
                losses['loss_points'] = all_losses['loss_points']
            else:
                raise AssertionError(f'{loss} loss is not defined')
        return losses

    __call__ = forward


if __name__ == "__main__":
    num_classes = 1                      # one-class crowd counting
    B, Q = 2, 128                        # batch=2, 128 point queries
    img_h, img_w = 256.0, 256.0

    key = jax.random.PRNGKey(0)
    k1, k2, k3 = jax.random.split(key, 3)
    pred_logits = jax.random.normal(k1, (B, Q, num_classes + 1), dtype=jnp.float32)
    pred_points = jax.random.uniform(k2, (B, Q, 2), dtype=jnp.float32)   # normalized preds

    n_gt = [5, 7]
    targets = []
    tkeys = jax.random.split(k3, B)
    for b in range(B):
        pts = jax.random.uniform(tkeys[b], (n_gt[b], 2), dtype=jnp.float32,
                                 minval=0.0, maxval=img_h)               # pixel coords
        labels = jnp.ones((n_gt[b],), dtype=jnp.int32)
        targets.append({'points': pts, 'labels': labels, 'density': float(n_gt[b])})

    outputs = {'pred_logits': pred_logits, 'pred_points': pred_points,
               'img_shape': (img_h, img_w), 'pq_stride': 8}

    criterion = SetCriterion(num_classes, matcher=None,
                             weight_dict={'loss_ce': 1.0, 'loss_points': 5.0},
                             eos_coef=0.5, losses=['labels', 'points'])

    losses = jax.block_until_ready(criterion(outputs, targets))

    # ---- numpy reference (uses the same indices as the on-device greedy matcher) ----
    tgt_points, tgt_labels, tgt_valid = _pack_targets(targets)
    scale = jnp.asarray([img_h, img_w], jnp.float32)
    src_idx = np.asarray(_greedy_match(pred_points, tgt_points / scale, tgt_valid))

    logits_np = np.asarray(pred_logits, dtype=np.float64)
    points_np = np.asarray(pred_points, dtype=np.float64)
    tgt_pts_np = np.asarray(tgt_points, dtype=np.float64)
    tgt_lab_np = np.asarray(tgt_labels)
    valid_np = np.asarray(tgt_valid)

    target_classes = np.zeros((B, Q), dtype=np.int64)
    sp, tp = [], []
    for b in range(B):
        for j in range(src_idx.shape[1]):
            if valid_np[b, j]:
                target_classes[b, src_idx[b, j]] = int(tgt_lab_np[b, j])
                sp.append(points_np[b, src_idx[b, j]])
                tp.append(tgt_pts_np[b, j] / np.array([img_h, img_w]))
    ew = np.ones(num_classes + 1, dtype=np.float64)
    ew[0] = criterion.eos_coef
    mx = logits_np.max(-1, keepdims=True)
    lse = mx[..., 0] + np.log(np.exp(logits_np - mx).sum(-1))
    tgt_logit = np.take_along_axis(logits_np, target_classes[..., None], -1)[..., 0]
    ce = lse - tgt_logit
    w = ew[target_classes]
    ref_ce = (ce * w).sum() / w.sum()
    sp = np.asarray(sp, dtype=np.float64)
    tp = np.asarray(tp, dtype=np.float64)
    d = sp - tp
    ad = np.abs(d)
    sl1 = np.where(ad < 1.0, 0.5 * d * d, ad - 0.5)
    num_points = max(float(valid_np.sum()), 1.0)
    ref_points = sl1.sum() / num_points

    for k, v in (('loss_ce', ref_ce), ('loss_points', ref_points)):
        got = float(losses[k])
        assert abs(got - float(v)) < 1e-4 * (1.0 + abs(float(v))), (k, got, float(v))

    print("KERNEL_OK")
</pallas_src>

<mosaic_0001>
module attributes {stable_mosaic.version = 11 : i64} {
  func.func @_fused_loss_kernel(%arg0: i32, %arg1: memref<8x128xf32, #tpu.memory_space<vmem>>, %arg2: memref<8x128xf32, #tpu.memory_space<vmem>>, %arg3: memref<8x128xi32, #tpu.memory_space<vmem>>, %arg4: memref<8x128xf32, #tpu.memory_space<vmem>>, %arg5: memref<8x128xf32, #tpu.memory_space<vmem>>, %arg6: memref<8x128xf32, #tpu.memory_space<vmem>>, %arg7: memref<8x128xf32, #tpu.memory_space<vmem>>) attributes {dimension_semantics = [#tpu.dimension_semantics<arbitrary>], iteration_bounds = array<i64: 1>, scalar_prefetch = 0 : i64, scratch_operands = 0 : i64, tpu.core_type = #tpu.core_type<tc>, window_params = [{transform_indices = @transform_0, window_bounds = array<i64: 8, 128>}, {transform_indices = @transform_1, window_bounds = array<i64: 8, 128>}, {transform_indices = @transform_2, window_bounds = array<i64: 8, 128>}, {pipeline_mode = #tpu.pipeline_mode<synchronous>, transform_indices = @transform_3, window_bounds = array<i64: 8, 128>}, {pipeline_mode = #tpu.pipeline_mode<synchronous>, transform_indices = @transform_4, window_bounds = array<i64: 8, 128>}, {pipeline_mode = #tpu.pipeline_mode<synchronous>, transform_indices = @transform_5, window_bounds = array<i64: 8, 128>}, {pipeline_mode = #tpu.pipeline_mode<synchronous>, transform_indices = @transform_6, window_bounds = array<i64: 8, 128>}]} {
    %c0_i32 = arith.constant 0 : i32
    %0 = arith.cmpi eq, %arg0, %c0_i32 : i32
    %1 = arith.extui %0 : i1 to i32
    %c0_i32_0 = arith.constant 0 : i32
    %2 = arith.cmpi ne, %1, %c0_i32_0 : i32
    scf.if %2 {
      %cst_22 = arith.constant 0.000000e+00 : f32
      %42 = vector.broadcast %cst_22 : f32 to vector<8x128xf32>
      %c0_23 = arith.constant 0 : index
      %c0_24 = arith.constant 0 : index
      %43 = vector.load %arg5[%c0_23, %c0_24] : memref<8x128xf32, #tpu.memory_space<vmem>>, vector<8x128xf32>
      tpu.vector_store %arg5[%c0_23, %c0_24], %42 {strides = array<i32>} : memref<8x128xf32, #tpu.memory_space<vmem>>, vector<8x128xf32>,
      %cst_25 = arith.constant 0.000000e+00 : f32
      %44 = vector.broadcast %cst_25 : f32 to vector<8x128xf32>
      %c0_26 = arith.constant 0 : index
      %c0_27 = arith.constant 0 : index
      %45 = vector.load %arg6[%c0_26, %c0_27] : memref<8x128xf32, #tpu.memory_space<vmem>>, vector<8x128xf32>
      tpu.vector_store %arg6[%c0_26, %c0_27], %44 {strides = array<i32>} : memref<8x128xf32, #tpu.memory_space<vmem>>, vector<8x128xf32>,
      %cst_28 = arith.constant 0.000000e+00 : f32
      %46 = vector.broadcast %cst_28 : f32 to vector<8x128xf32>
      %c0_29 = arith.constant 0 : index
      %c0_30 = arith.constant 0 : index
      %47 = vector.load %arg4[%c0_29, %c0_30] : memref<8x128xf32, #tpu.memory_space<vmem>>, vector<8x128xf32>
      %48 = math.absf %47 : vector<8x128xf32>
      %cst_31 = arith.constant 1.000000e+00 : f32
      %49 = vector.broadcast %cst_31 : f32 to vector<8x128xf32>
      %50 = arith.cmpf olt, %48, %49 : vector<8x128xf32>
      %cst_32 = arith.constant 5.000000e-01 : f32
      %51 = vector.broadcast %cst_32 : f32 to vector<8x128xf32>
      %52 = arith.mulf %51, %47 : vector<8x128xf32>
      %53 = arith.mulf %52, %47 : vector<8x128xf32>
      %cst_33 = arith.constant 5.000000e-01 : f32
      %54 = vector.broadcast %cst_33 : f32 to vector<8x128xf32>
      %55 = arith.subf %48, %54 : vector<8x128xf32>
      %56 = arith.select %50, %53, %55 : vector<8x128xi1>, vector<8x128xf32>
      %57 = arith.addf %46, %56 : vector<8x128xf32>
      %c0_34 = arith.constant 0 : index
      %c0_35 = arith.constant 0 : index
      %58 = vector.load %arg7[%c0_34, %c0_35] : memref<8x128xf32, #tpu.memory_space<vmem>>, vector<8x128xf32>
      tpu.vector_store %arg7[%c0_34, %c0_35], %57 {strides = array<i32>} : memref<8x128xf32, #tpu.memory_space<vmem>>, vector<8x128xf32>,
    } else {
    }
    %cst = arith.constant 0.000000e+00 : f32
    %3 = vector.broadcast %cst : f32 to vector<8x128xf32>
    %cst_1 = arith.constant 0.000000e+00 : f32
    %4 = vector.broadcast %cst_1 : f32 to vector<8x128xf32>
    %c0 = arith.constant 0 : index
    %c0_2 = arith.constant 0 : index
    %5 = vector.load %arg1[%c0, %c0_2] : memref<8x128xf32, #tpu.memory_space<vmem>>, vector<8x128xf32>
    %c0_3 = arith.constant 0 : index
    %c0_4 = arith.constant 0 : index
    %6 = vector.load %arg2[%c0_3, %c0_4] : memref<8x128xf32, #tpu.memory_space<vmem>>, vector<8x128xf32>
    %c0_5 = arith.constant 0 : index
    %c0_6 = arith.constant 0 : index
    %7 = vector.load %arg3[%c0_5, %c0_6] : memref<8x128xi32, #tpu.memory_space<vmem>>, vector<8x128xi32>
    %c0_i32_7 = arith.constant 0 : i32
    %8 = vector.broadcast %c0_i32_7 : i32 to vector<8x128xi32>
    %9 = arith.cmpi sge, %7, %8 : vector<8x128xi32>
    %10 = arith.extui %9 : vector<8x128xi1> to vector<8x128xi32>
    %11 = arith.sitofp %10 : vector<8x128xi32> to vector<8x128xf32>
    %c1_i32 = arith.constant 1 : i32
    %12 = vector.broadcast %c1_i32 : i32 to vector<8x128xi32>
    %13 = arith.cmpi eq, %7, %12 : vector<8x128xi32>
    %14 = arith.select %13, %6, %5 : vector<8x128xi1>, vector<8x128xf32>
    %15 = arith.select %13, %5, %6 : vector<8x128xi1>, vector<8x128xf32>
    %16 = arith.subf %15, %14 : vector<8x128xf32>
    %cst_8 = arith.constant 0.000000e+00 : f32
    %17 = vector.broadcast %cst_8 : f32 to vector<8x128xf32>
    %18 = arith.maximumf %16, %17 : vector<8x128xf32>
    %19 = math.absf %16 : vector<8x128xf32>
    %cst_9 = arith.constant 0.000000e+00 : f32
    %20 = vector.broadcast %cst_9 : f32 to vector<8x128xf32>
    %21 = arith.subf %20, %19 : vector<8x128xf32>
    %22 = math.exp %21 : vector<8x128xf32>
    %cst_10 = arith.constant 1.000000e+00 : f32
    %23 = vector.broadcast %cst_10 : f32 to vector<8x128xf32>
    %24 = arith.addf %23, %22 : vector<8x128xf32>
    %25 = math.log %24 : vector<8x128xf32>
    %26 = arith.addf %18, %25 : vector<8x128xf32>
    %c0_i32_11 = arith.constant 0 : i32
    %27 = vector.broadcast %c0_i32_11 : i32 to vector<8x128xi32>
    %28 = arith.cmpi eq, %7, %27 : vector<8x128xi32>
    %cst_12 = arith.constant 5.000000e-01 : f32
    %cst_13 = arith.constant 1.000000e+00 : f32
    %29 = vector.broadcast %cst_12 : f32 to vector<8x128xf32>
    %30 = vector.broadcast %cst_13 : f32 to vector<8x128xf32>
    %31 = arith.select %28, %29, %30 : vector<8x128xi1>, vector<8x128xf32>
    %32 = arith.mulf %31, %11 : vector<8x128xf32>
    %33 = arith.mulf %26, %32 : vector<8x128xf32>
    %34 = arith.addf %3, %33 : vector<8x128xf32>
    %35 = arith.addf %4, %32 : vector<8x128xf32>
    %c0_14 = arith.constant 0 : index
    %c0_15 = arith.constant 0 : index
    %36 = vector.load %arg5[%c0_14, %c0_15] : memref<8x128xf32, #tpu.memory_space<vmem>>, vector<8x128xf32>
    %37 = arith.addf %36, %34 : vector<8x128xf32>
    %c0_16 = arith.constant 0 : index
    %c0_17 = arith.constant 0 : index
    %38 = vector.load %arg5[%c0_16, %c0_17] : memref<8x128xf32, #tpu.memory_space<vmem>>, vector<8x128xf32>
    tpu.vector_store %arg5[%c0_16, %c0_17], %37 {strides = array<i32>} : memref<8x128xf32, #tpu.memory_space<vmem>>, vector<8x128xf32>,
    %c0_18 = arith.constant 0 : index
    %c0_19 = arith.constant 0 : index
    %39 = vector.load %arg6[%c0_18, %c0_19] : memref<8x128xf32, #tpu.memory_space<vmem>>, vector<8x128xf32>
    %40 = arith.addf %39, %35 : vector<8x128xf32>
    %c0_20 = arith.constant 0 : index
    %c0_21 = arith.constant 0 : index
    %41 = vector.load %arg6[%c0_20, %c0_21] : memref<8x128xf32, #tpu.memory_space<vmem>>, vector<8x128xf32>
    tpu.vector_store %arg6[%c0_20, %c0_21], %40 {strides = array<i32>} : memref<8x128xf32, #tpu.memory_space<vmem>>, vector<8x128xf32>,
    return
  }
  func.func @transform_0(%arg0: i32) -> (i32, i32) {
    %c0_i32 = arith.constant 0 : i32
    %c0_i32_0 = arith.constant 0 : i32
    return %c0_i32, %arg0 : i32, i32
  }
  func.func @transform_1(%arg0: i32) -> (i32, i32) {
    %c0_i32 = arith.constant 0 : i32
    %c0_i32_0 = arith.constant 0 : i32
    return %c0_i32, %arg0 : i32, i32
  }
  func.func @transform_2(%arg0: i32) -> (i32, i32) {
    %c0_i32 = arith.constant 0 : i32
    %c0_i32_0 = arith.constant 0 : i32
    return %c0_i32, %arg0 : i32, i32
  }
  func.func @transform_3(%arg0: i32) -> (i32, i32) {
    %c0_i32 = arith.constant 0 : i32
    %c0_i32_0 = arith.constant 0 : i32
    %c0_i32_1 = arith.constant 0 : i32
    return %c0_i32, %c0_i32_0 : i32, i32
  }
  func.func @transform_4(%arg0: i32) -> (i32, i32) {
    %c0_i32 = arith.constant 0 : i32
    %c0_i32_0 = arith.constant 0 : i32
    %c0_i32_1 = arith.constant 0 : i32
    return %c0_i32, %c0_i32_0 : i32, i32
  }
  func.func @transform_5(%arg0: i32) -> (i32, i32) {
    %c0_i32 = arith.constant 0 : i32
    %c0_i32_0 = arith.constant 0 : i32
    %c0_i32_1 = arith.constant 0 : i32
    return %c0_i32, %c0_i32_0 : i32, i32
  }
  func.func @transform_6(%arg0: i32) -> (i32, i32) {
    %c0_i32 = arith.constant 0 : i32
    %c0_i32_0 = arith.constant 0 : i32
    %c0_i32_1 = arith.constant 0 : i32
    return %c0_i32, %c0_i32_0 : i32, i32
  }
}

</mosaic_0001>

<llo_original>
// kernel: custom-call.2
$region0: #{custom-call.2}
  %s0 = inlined_call_operand.vmem [shape: pred[2,128], index: 0, kind: output, shape index: {}]

// kernel: _fused_losses.1
$region0: #{_fused_losses.1}
  #allocation0 [shape = 'u32[]', space=smem, size = 0x4, offset = 0x4, fixed_abs, tag = 'smem constant byte address 0x4 - core index']
  #allocation1 [shape = 'u32[144,128]{1,0:T(1,128)}', space=vmem, size = 0x12000, scoped, tag = 'internal scratch']
  %s0 = inlined_call_operand.vmem [shape: f32[8,128], index: 0, kind: input, shape index: {}]
  %s1 = inlined_call_operand.vmem [shape: f32[8,128], index: 1, kind: input, shape index: {}]
  %s2 = inlined_call_operand.vmem [shape: s32[8,128], index: 2, kind: input, shape index: {}]
  %s3 = inlined_call_operand.vmem [shape: f32[8,128], index: 3, kind: input, shape index: {}]
  %s4 = inlined_call_operand.vmem [shape: f32[8,128], index: 4, kind: output, shape index: {0}]
  %s5 = inlined_call_operand.vmem [shape: f32[8,128], index: 5, kind: output, shape index: {1}]
  %s6 = inlined_call_operand.vmem [shape: f32[8,128], index: 6, kind: output, shape index: {2}]
  %7 = xla_tuple %s4, %s5, %s6
  %s8 = sld [smem:[#allocation0]]
  $region46: #{_fused_losses.1} parent=0
    _
  %s10 = ssub.s32 1, %s8
  %s11 = scalar_select 0, %s10, %s8
  // Predicated region
  $region2: #{_fused_losses.1} parent=0 // pred_check
    _
  $region3: #{_fused_losses.1} parent=0 // pred_check_branch
    %13 = sbr.rel (0) target = $region5
  $region4: #{_fused_losses.1} parent=0 // pred_region
    _
  $region5: #{_fused_losses.1} parent=0 // pred_fallthru
    _
  // Predicated region
  $region6: #{_fused_losses.1} parent=0 // pred_check
    _
  $region7: #{_fused_losses.1} parent=0 // pred_check_branch
    %15 = sbr.rel (0) target = $region9
  $region8: #{_fused_losses.1} parent=0 // pred_region
    _
  $region9: #{_fused_losses.1} parent=0 // pred_fallthru
    _
  // Predicated region
  $region10: #{_fused_losses.1} parent=0 // pred_check
    _
  $region11: #{_fused_losses.1} parent=0 // pred_check_branch
    %17 = sbr.rel (0) target = $region13
  $region12: #{_fused_losses.1} parent=0 // pred_region
    _
  $region13: #{_fused_losses.1} parent=0 // pred_fallthru
    _
  // Predicated region
  $region14: #{_fused_losses.1} parent=0 // pred_check
    _
  $region15: #{_fused_losses.1} parent=0 // pred_check_branch
    %19 = sbr.rel (0) target = $region17
  $region16: #{_fused_losses.1} parent=0 // pred_region
    _
  $region17: #{_fused_losses.1} parent=0 // pred_fallthru
    _
  %p20 = scmp.eq.s32.totalorder 0, 0
  // Predicated region
  $region18: #{_fused_losses.1} parent=0 // pred_check
    %p21 = pneg %p20
  $region19: #{_fused_losses.1} parent=0 // pred_check_branch
    %23 = sbr.rel (%p21) target = $region21
  $region20: #{_fused_losses.1} parent=0 // pred_region
    %24 = vst [vmem:[%s4] sm:$0xff] 0.0
    %25 = vst [vmem:[%s5] sm:$0xff] 0.0
    %v26 = vld [vmem:[%s3] sm:$0xff]
    %v27 = vand.u32 2147483647, %v26
    %vm28 = vcmp.lt.f32.partialorder %v27, 1.0
    %v29 = vmul.f32 %v26, 0.5
    %v30 = vmul.f32 %v29, %v26
    %v31 = vsub.f32 %v27, 0.5
    %v32 = vsel %vm28, %v30, %v31
    %v33 = vadd.f32 %v32, 0.0
    %34 = vst [vmem:[%s6] sm:$0xff] %v33
  $region21: #{_fused_losses.1} parent=0 // pred_fallthru
    _
  %v35 = vld [vmem:[%s0] sm:$0xff]
  %v36 = vld [vmem:[%s1] sm:$0xff]
  %v37 = vld [vmem:[%s2] sm:$0xff]
  %vm38 = vcmp.ge.s32.totalorder %v37, 0
  %v39 = vsel %vm38, 1, 0
  %v40 = vcvt.s32.f32 %v39
  %vm41 = vcmp.eq.s32.totalorder %v37, 1
  %v42 = vsel %vm41, %v36, %v35
  %v43 = vsel %vm41, %v35, %v36
  %v44 = vsub.f32 %v43, %v42
  %v45 = vmax.f32 %v44, 0.0
  %v46 = vand.u32 2147483647, %v44
  %v47 = vsub.f32 0.0, %v46
  %v48 = vmul.f32 %v47, 1.442695
  %v49 = vpow.pop %v48
  %v50 = vadd.f32 %v49, 1.0
  %v51 = vlog2.pop %v50
  %v52 = vmul.f32 %v51, 0.6931472
  %v53 = vadd.f32 %v45, %v52
  %vm54 = vcmp.eq.s32.totalorder %v37, 0
  %v55 = vsel %vm54, 0.5, 1.0
  %v56 = vmul.f32 %v55, %v40
  %v57 = vmul.f32 %v53, %v56
  %v58 = vadd.f32 %v57, 0.0
  %v59 = vadd.f32 %v56, 0.0
  %v60 = vld [vmem:[%s4] sm:$0xff]
  %v61 = vadd.f32 %v60, %v58
  %62 = vst [vmem:[%s4] sm:$0xff] %v61
  %v63 = vld [vmem:[%s5] sm:$0xff]
  %v64 = vadd.f32 %v63, %v59
  %65 = vst [vmem:[%s5] sm:$0xff] %v64
  // Predicated region
  $region22: #{_fused_losses.1} parent=0 // pred_check
    _
  $region23: #{_fused_losses.1} parent=0 // pred_check_branch
    %67 = sbr.rel (0) target = $region25
  $region24: #{_fused_losses.1} parent=0 // pred_region
    _
  $region25: #{_fused_losses.1} parent=0 // pred_fallthru
    _
  // Predicated region
  $region26: #{_fused_losses.1} parent=0 // pred_check
    _
  $region27: #{_fused_losses.1} parent=0 // pred_check_branch
    %69 = sbr.rel (0) target = $region29
  $region28: #{_fused_losses.1} parent=0 // pred_region
    _
  $region29: #{_fused_losses.1} parent=0 // pred_fallthru
    _
  // Predicated region
  $region30: #{_fused_losses.1} parent=0 // pred_check
    _
  $region31: #{_fused_losses.1} parent=0 // pred_check_branch
    %71 = sbr.rel (0) target = $region33
  $region32: #{_fused_losses.1} parent=0 // pred_region
    _
  $region33: #{_fused_losses.1} parent=0 // pred_fallthru
    _
  // Predicated region
  $region34: #{_fused_losses.1} parent=0 // pred_check
    _
  $region35: #{_fused_losses.1} parent=0 // pred_check_branch
    %73 = sbr.rel (0) target = $region37
  $region36: #{_fused_losses.1} parent=0 // pred_region
    _
  $region37: #{_fused_losses.1} parent=0 // pred_fallthru
    _
  // Predicated region
  $region38: #{_fused_losses.1} parent=0 // pred_check
    _
  $region39: #{_fused_losses.1} parent=0 // pred_check_branch
    %75 = sbr.rel (0) target = $region41
  $region40: #{_fused_losses.1} parent=0 // pred_region
    _
  $region41: #{_fused_losses.1} parent=0 // pred_fallthru
    _
  // Predicated region
  $region42: #{_fused_losses.1} parent=0 // pred_check
    _
  $region43: #{_fused_losses.1} parent=0 // pred_check_branch
    %77 = sbr.rel (0) target = $region45
  $region44: #{_fused_losses.1} parent=0 // pred_region
    _
  $region45: #{_fused_losses.1} parent=0 // pred_fallthru
    _

</llo_original>
